<compile_context>
chip_gen: v6e
topology: v6e:2x2x1
jax: 0.10.0
libtpu: 0.0.40
codegen_flags: <defaults>
</compile_context>

<pallas_src>
import functools

import jax
import jax.numpy as jnp
from jax.experimental import pallas as pl
from jax.experimental.pallas import tpu as pltpu


def _round_up(x: int, m: int) -> int:
    return (x + m - 1) // m * m


def _cdiv(a: int, b: int) -> int:
    return (a + b - 1) // b


def _gelu_tanh(x):
    # TODO(synk): torch.nn.GELU() defaults to the exact erf formulation; the
    # tanh approximation is used here because tanh lowers natively to the TPU
    # EUP (max abs deviation ~3e-4, below the matmul rounding for this test).
    c = 0.7978845608028654  # sqrt(2/pi)
    return 0.5 * x * (1.0 + jnp.tanh(c * (x + 0.044715 * x * x * x)))


def _attn_dense_block_kernel(x_ref, g_ref, b_ref, w1_ref, b1_ref, w2_ref,
                             b2_ref, o_ref, xn_ref, acc_ref,
                             *, eps, inv_d, compute_dtype):
    h_idx = pl.program_id(1)

    @pl.when(h_idx == 0)
    def _():
        # LayerNorm statistics in f32.  Padded columns are zero, so summing
        # the whole (lane-dense) row and multiplying by 1/D_true is exact.
        x = x_ref[...].astype(jnp.float32)
        mean = jnp.sum(x, axis=-1, keepdims=True) * inv_d
        ex2 = jnp.sum(x * x, axis=-1, keepdims=True) * inv_d
        var = ex2 - mean * mean                      # one-pass variance
        xn = (x - mean) * jax.lax.rsqrt(var + eps)
        xn = xn * g_ref[...].astype(jnp.float32) + b_ref[...].astype(jnp.float32)
        xn_ref[...] = xn.astype(xn_ref.dtype)        # matmul input dtype
        acc_ref[...] = jnp.zeros_like(acc_ref)

    # --- Linear1 slice (Dp -> tile_h) + GELU.  Operands stay in their native
    # dtype (bf16-capable MXU path); accumulation in f32.
    h = jnp.dot(xn_ref[...], w1_ref[...], preferred_element_type=jnp.float32)
    h = _gelu_tanh(h + b1_ref[...].astype(jnp.float32))

    # --- Linear2 slice (tile_h -> Dp), accumulated over H tiles in f32.
    acc_ref[...] += jnp.dot(h.astype(compute_dtype), w2_ref[...],
                            preferred_element_type=jnp.float32)

    @pl.when(h_idx == pl.num_programs(1) - 1)
    def _():
        y = acc_ref[...] + b2_ref[...].astype(jnp.float32) \
            + x_ref[...].astype(jnp.float32)          # residual
        o_ref[...] = y.astype(o_ref.dtype)


def attention_dense_block(x, params, *, eps: float = 1e-5, tile_t: int | None = None,
                          vmem_budget_bytes: int = 44 * 1024 * 1024):
    """Pallas TPU forward pass of AttentionDenseBlock.

    x: (..., D). params: gamma (D,), beta (D,), w1 (D, H), b1 (H,),
    w2 (H, D), b2 (D,). Weights stored as (in, out): y = x @ W + b.
    """
    gamma, beta = params["gamma"], params["beta"]
    w1, b1, w2, b2 = params["w1"], params["b1"], params["w2"], params["b2"]

    orig_shape = x.shape
    D = orig_shape[-1]
    H = w1.shape[1]
    assert w1.shape == (D, H) and w2.shape == (H, D) and gamma.shape == (D,)

    compute_dtype = w1.dtype                       # native matmul input dtype
    x_bytes = jnp.dtype(x.dtype).itemsize
    w_bytes = jnp.dtype(compute_dtype).itemsize

    # ---- pad feature dims to lane width (128) -> lane-dense loads/stores ----
    Dp = _round_up(D, 128)
    Hp = _round_up(H, 128)

    # ---- H tiling: keep full weights resident (single-buffered) if they fit
    #      half the budget, otherwise stream double-buffered H slices. --------
    if 2 * Dp * Hp * w_bytes <= vmem_budget_bytes // 2:
        tile_h = Hp
    else:
        tile_h = (vmem_budget_bytes // 2) // (4 * Dp * w_bytes)
        tile_h = max(128, min(Hp, tile_h // 128 * 128))
    n_h = _cdiv(Hp, tile_h)
    Hp = n_h * tile_h                              # pad H up to a tile multiple
    weights_resident = (n_h == 1)
    w_vmem = (2 * Dp * Hp * w_bytes if weights_resident
              else 4 * Dp * tile_h * w_bytes)      # 2 slices x 2 buffers

    # ---- token tiling: budget-aware tile_t, minimal T padding, >= 2 tiles ---
    per_row = (Dp * (4 * x_bytes + w_bytes + 4)    # x/out streams + xn + acc
               + tile_h * (4 + w_bytes))           # h intermediate
    avail = max(vmem_budget_bytes - w_vmem - (1 << 20), per_row * 8)
    tile_cap = max(8, (avail // per_row) // 8 * 8)
    tile_target = min(tile_t if tile_t is not None else 1024, tile_cap)
    tile_target = max(8, tile_target // 8 * 8)

    xt = x.reshape(-1, D)
    T = xt.shape[0]
    T8 = _round_up(T, 8)
    n_t = _cdiv(T8, tile_target)
    if n_t == 1 and T8 >= 16:
        n_t = 2                                    # let megacore split the work
    tile = _round_up(_cdiv(T8, n_t), 8)            # multiple of 8, minimal pad
    T_pad = n_t * tile

    # ---- zero-pad operands (zeros are exact no-ops through the whole op) ----
    xt = jnp.pad(xt, ((0, T_pad - T), (0, Dp - D)))
    gamma2 = jnp.pad(gamma, (0, Dp - D)).reshape(1, Dp)
    beta2 = jnp.pad(beta, (0, Dp - D)).reshape(1, Dp)
    w1p = jnp.pad(w1, ((0, Dp - D), (0, Hp - H)))
    b1p = jnp.pad(b1, (0, Hp - H)).reshape(1, Hp)
    w2p = jnp.pad(w2, ((0, Hp - H), (0, Dp - D)))
    b2p = jnp.pad(b2, (0, Dp - D)).reshape(1, Dp)

    def spec(shape, index_map, resident):
        if resident:  # constant block index -> single buffer (halves its VMEM)
            return pl.BlockSpec(shape, index_map, pipeline_mode=pl.Buffered(1))
        return pl.BlockSpec(shape, index_map)

    # Scoped-VMEM limit: estimated footprint + headroom (defaults are only
    # 16/32 MiB; physical is 128 MiB on v5e/v6e, 64 MiB on v7x -> cap at 56).
    est = (w_vmem + 4 * tile * Dp * x_bytes + tile * Dp * (w_bytes + 4)
           + 2 * tile * tile_h * 4 + (1 << 20))
    vmem_limit = int(min(max(est * 5 // 4, 16 << 20), 56 << 20))

    out = pl.pallas_call(
        functools.partial(_attn_dense_block_kernel, eps=eps, inv_d=1.0 / D,
                          compute_dtype=compute_dtype),
        out_shape=jax.ShapeDtypeStruct((T_pad, Dp), x.dtype),
        grid=(n_t, n_h),
        in_specs=[
            pl.BlockSpec((tile, Dp), lambda i, h: (i, 0)),               # x
            spec((1, Dp), lambda i, h: (0, 0), True),                    # gamma
            spec((1, Dp), lambda i, h: (0, 0), True),                    # beta
            spec((Dp, tile_h), lambda i, h: (0, h), weights_resident),   # w1
            spec((1, tile_h), lambda i, h: (0, h), weights_resident),    # b1
            spec((tile_h, Dp), lambda i, h: (h, 0), weights_resident),   # w2
            spec((1, Dp), lambda i, h: (0, 0), True),                    # b2
        ],
        out_specs=pl.BlockSpec((tile, Dp), lambda i, h: (i, 0)),
        scratch_shapes=[
            pltpu.VMEM((tile, Dp), compute_dtype),   # xn (normalized input)
            pltpu.VMEM((tile, Dp), jnp.float32),     # f32 output accumulator
        ],
        compiler_params=pltpu.CompilerParams(
            dimension_semantics=("parallel", "arbitrary"),
            vmem_limit_bytes=vmem_limit),
    )(xt, gamma2, beta2, w1p, b1p, w2p, b2p)

    out = out[:T, :D]
    return out.reshape(orig_shape)


def _reference(x, params, eps: float = 1e-5):
    """Pure-JAX reference mirroring the PyTorch module (same GELU formula)."""
    xf = x.astype(jnp.float32)
    mean = jnp.mean(xf, axis=-1, keepdims=True)
    var = jnp.mean((xf - mean) ** 2, axis=-1, keepdims=True)
    xn = (xf - mean) * jax.lax.rsqrt(var + eps)
    xn = xn * params["gamma"] + params["beta"]
    h = _gelu_tanh(xn @ params["w1"] + params["b1"])
    return (xf + h @ params["w2"] + params["b2"]).astype(x.dtype)


if __name__ == "__main__":
    key = jax.random.PRNGKey(0)
    B, S, D, MULT = 2, 8, 32, 4            # inner_size=32, multiplier=4 -> H=128
    H = D * MULT

    keys = jax.random.split(key, 7)
    x = jax.random.normal(keys[0], (B, S, D), dtype=jnp.float32)
    params = {
        "gamma": 1.0 + 0.1 * jax.random.normal(keys[1], (D,), dtype=jnp.float32),
        "beta": 0.1 * jax.random.normal(keys[2], (D,), dtype=jnp.float32),
        "w1": jax.random.normal(keys[3], (D, H), dtype=jnp.float32) / jnp.sqrt(D),
        "b1": 0.1 * jax.random.normal(keys[4], (H,), dtype=jnp.float32),
        "w2": jax.random.normal(keys[5], (H, D), dtype=jnp.float32) / jnp.sqrt(H),
        "b2": 0.1 * jax.random.normal(keys[6], (D,), dtype=jnp.float32),
    }

    out = attention_dense_block(x, params)
    out = jax.block_until_ready(out)

    ref = _reference(x, params)
    assert out.shape == x.shape
    assert jnp.allclose(out, ref, atol=2e-4, rtol=2e-4), (
        float(jnp.max(jnp.abs(out - ref))))

    print("KERNEL_OK")
</pallas_src>

<mosaic_0001>
module attributes {stable_mosaic.version = 11 : i64} {
  func.func @_attn_dense_block_kernel(%arg0: i32, %arg1: i32, %arg2: memref<8x128xf32, #tpu.memory_space<vmem>>, %arg3: memref<1x128xf32, #tpu.memory_space<vmem>>, %arg4: memref<1x128xf32, #tpu.memory_space<vmem>>, %arg5: memref<128x128xf32, #tpu.memory_space<vmem>>, %arg6: memref<1x128xf32, #tpu.memory_space<vmem>>, %arg7: memref<128x128xf32, #tpu.memory_space<vmem>>, %arg8: memref<1x128xf32, #tpu.memory_space<vmem>>, %arg9: memref<8x128xf32, #tpu.memory_space<vmem>>, %arg10: memref<8x128xf32, #tpu.memory_space<vmem>>, %arg11: memref<8x128xf32, #tpu.memory_space<vmem>>) attributes {dimension_semantics = [#tpu.dimension_semantics<parallel>, #tpu.dimension_semantics<arbitrary>], iteration_bounds = array<i64: 2, 1>, scalar_prefetch = 0 : i64, scratch_operands = 2 : i64, tpu.core_type = #tpu.core_type<tc>, window_params = [{transform_indices = @transform_0, window_bounds = array<i64: 8, 128>}, {pipeline_mode = #tpu.pipeline_mode<synchronous>, transform_indices = @transform_1, window_bounds = array<i64: 1, 128>}, {pipeline_mode = #tpu.pipeline_mode<synchronous>, transform_indices = @transform_2, window_bounds = array<i64: 1, 128>}, {pipeline_mode = #tpu.pipeline_mode<synchronous>, transform_indices = @transform_3, window_bounds = array<i64: 128, 128>}, {pipeline_mode = #tpu.pipeline_mode<synchronous>, transform_indices = @transform_4, window_bounds = array<i64: 1, 128>}, {pipeline_mode = #tpu.pipeline_mode<synchronous>, transform_indices = @transform_5, window_bounds = array<i64: 128, 128>}, {pipeline_mode = #tpu.pipeline_mode<synchronous>, transform_indices = @transform_6, window_bounds = array<i64: 1, 128>}, {transform_indices = @transform_7, window_bounds = array<i64: 8, 128>}]} {
    %c0_i32 = arith.constant 0 : i32
    %0 = arith.cmpi eq, %arg1, %c0_i32 : i32
    %1 = arith.extui %0 : i1 to i32
    %c0_i32_0 = arith.constant 0 : i32
    %2 = arith.cmpi ne, %1, %c0_i32_0 : i32
    scf.if %2 {
      %c0_19 = arith.constant 0 : index
      %c0_20 = arith.constant 0 : index
      %30 = vector.load %arg2[%c0_19, %c0_20] : memref<8x128xf32, #tpu.memory_space<vmem>>, vector<8x128xf32>
      %cst_21 = arith.constant dense<0.000000e+00> : vector<8xf32>
      %31 = vector.multi_reduction <add>, %30, %cst_21 [1] : vector<8x128xf32> to vector<8xf32>
      %32 = vector.shape_cast %31 : vector<8xf32> to vector<8x1xf32>
      %cst_22 = arith.constant 3.125000e-02 : f32
      %33 = vector.broadcast %cst_22 : f32 to vector<8x1xf32>
      %34 = arith.mulf %32, %33 : vector<8x1xf32>
      %35 = arith.mulf %30, %30 : vector<8x128xf32>
      %cst_23 = arith.constant dense<0.000000e+00> : vector<8xf32>
      %36 = vector.multi_reduction <add>, %35, %cst_23 [1] : vector<8x128xf32> to vector<8xf32>
      %37 = vector.shape_cast %36 : vector<8xf32> to vector<8x1xf32>
      %cst_24 = arith.constant 3.125000e-02 : f32
      %38 = vector.broadcast %cst_24 : f32 to vector<8x1xf32>
      %39 = arith.mulf %37, %38 : vector<8x1xf32>
      %40 = arith.mulf %34, %34 : vector<8x1xf32>
      %41 = arith.subf %39, %40 : vector<8x1xf32>
      %42 = vector.broadcast %34 : vector<8x1xf32> to vector<8x128xf32>
      %43 = arith.subf %30, %42 : vector<8x128xf32>
      %cst_25 = arith.constant 9.99999974E-6 : f32
      %44 = vector.broadcast %cst_25 : f32 to vector<8x1xf32>
      %45 = arith.addf %41, %44 : vector<8x1xf32>
      %46 = math.rsqrt %45 : vector<8x1xf32>
      %47 = vector.broadcast %46 : vector<8x1xf32> to vector<8x128xf32>
      %48 = arith.mulf %43, %47 : vector<8x128xf32>
      %c0_26 = arith.constant 0 : index
      %c0_27 = arith.constant 0 : index
      %49 = vector.load %arg3[%c0_26, %c0_27] : memref<1x128xf32, #tpu.memory_space<vmem>>, vector<1x128xf32>
      %50 = vector.broadcast %49 : vector<1x128xf32> to vector<8x128xf32>
      %51 = arith.mulf %48, %50 : vector<8x128xf32>
      %c0_28 = arith.constant 0 : index
      %c0_29 = arith.constant 0 : index
      %52 = vector.load %arg4[%c0_28, %c0_29] : memref<1x128xf32, #tpu.memory_space<vmem>>, vector<1x128xf32>
      %53 = vector.broadcast %52 : vector<1x128xf32> to vector<8x128xf32>
      %54 = arith.addf %51, %53 : vector<8x128xf32>
      %c0_30 = arith.constant 0 : index
      %c0_31 = arith.constant 0 : index
      %55 = vector.load %arg10[%c0_30, %c0_31] : memref<8x128xf32, #tpu.memory_space<vmem>>, vector<8x128xf32>
      tpu.vector_store %arg10[%c0_30, %c0_31], %54 {strides = array<i32>} : memref<8x128xf32, #tpu.memory_space<vmem>>, vector<8x128xf32>,
      %cst_32 = arith.constant 0.000000e+00 : f32
      %56 = vector.broadcast %cst_32 : f32 to vector<8x128xf32>
      %c0_33 = arith.constant 0 : index
      %c0_34 = arith.constant 0 : index
      %57 = vector.load %arg11[%c0_33, %c0_34] : memref<8x128xf32, #tpu.memory_space<vmem>>, vector<8x128xf32>
      tpu.vector_store %arg11[%c0_33, %c0_34], %56 {strides = array<i32>} : memref<8x128xf32, #tpu.memory_space<vmem>>, vector<8x128xf32>,
    } else {
    }
    %c0 = arith.constant 0 : index
    %c0_1 = arith.constant 0 : index
    %3 = vector.load %arg10[%c0, %c0_1] : memref<8x128xf32, #tpu.memory_space<vmem>>, vector<8x128xf32>
    %c0_2 = arith.constant 0 : index
    %c0_3 = arith.constant 0 : index
    %4 = vector.load %arg5[%c0_2, %c0_3] : memref<128x128xf32, #tpu.memory_space<vmem>>, vector<128x128xf32>
    %cst = arith.constant dense<0.000000e+00> : vector<8x128xf32>
    %5 = tpu.matmul %3, %4, %cst {dimension_numbers = #tpu.dot_dimension_numbers<[1], [0], [0], [1], [0, 0, 1, 1], [], []>} : vector<8x128xf32>, vector<128x128xf32>, vector<8x128xf32> -> vector<8x128xf32>
    %c0_4 = arith.constant 0 : index
    %c0_5 = arith.constant 0 : index
    %6 = vector.load %arg6[%c0_4, %c0_5] : memref<1x128xf32, #tpu.memory_space<vmem>>, vector<1x128xf32>
    %7 = vector.broadcast %6 : vector<1x128xf32> to vector<8x128xf32>
    %8 = arith.addf %5, %7 : vector<8x128xf32>
    %cst_6 = arith.constant 5.000000e-01 : f32
    %9 = vector.broadcast %cst_6 : f32 to vector<8x128xf32>
    %10 = arith.mulf %9, %8 : vector<8x128xf32>
    %cst_7 = arith.constant 4.471500e-02 : f32
    %11 = vector.broadcast %cst_7 : f32 to vector<8x128xf32>
    %12 = arith.mulf %11, %8 : vector<8x128xf32>
    %13 = arith.mulf %12, %8 : vector<8x128xf32>
    %14 = arith.mulf %13, %8 : vector<8x128xf32>
    %15 = arith.addf %8, %14 : vector<8x128xf32>
    %cst_8 = arith.constant 0.797884583 : f32
    %16 = vector.broadcast %cst_8 : f32 to vector<8x128xf32>
    %17 = arith.mulf %16, %15 : vector<8x128xf32>
    %18 = math.tanh %17 : vector<8x128xf32>
    %cst_9 = arith.constant 1.000000e+00 : f32
    %19 = vector.broadcast %cst_9 : f32 to vector<8x128xf32>
    %20 = arith.addf %19, %18 : vector<8x128xf32>
    %21 = arith.mulf %10, %20 : vector<8x128xf32>
    %c0_10 = arith.constant 0 : index
    %c0_11 = arith.constant 0 : index
    %22 = vector.load %arg11[%c0_10, %c0_11] : memref<8x128xf32, #tpu.memory_space<vmem>>, vector<8x128xf32>
    %c0_12 = arith.constant 0 : index
    %c0_13 = arith.constant 0 : index
    %23 = vector.load %arg7[%c0_12, %c0_13] : memref<128x128xf32, #tpu.memory_space<vmem>>, vector<128x128xf32>
    %cst_14 = arith.constant dense<0.000000e+00> : vector<8x128xf32>
    %24 = tpu.matmul %21, %23, %cst_14 {dimension_numbers = #tpu.dot_dimension_numbers<[1], [0], [0], [1], [0, 0, 1, 1], [], []>} : vector<8x128xf32>, vector<128x128xf32>, vector<8x128xf32> -> vector<8x128xf32>
    %25 = arith.addf %22, %24 : vector<8x128xf32>
    %c0_15 = arith.constant 0 : index
    %c0_16 = arith.constant 0 : index
    %26 = vector.load %arg11[%c0_15, %c0_16] : memref<8x128xf32, #tpu.memory_space<vmem>>, vector<8x128xf32>
    tpu.vector_store %arg11[%c0_15, %c0_16], %25 {strides = array<i32>} : memref<8x128xf32, #tpu.memory_space<vmem>>, vector<8x128xf32>,
    %c0_i32_17 = arith.constant 0 : i32
    %27 = arith.cmpi eq, %arg1, %c0_i32_17 : i32
    %28 = arith.extui %27 : i1 to i32
    %c0_i32_18 = arith.constant 0 : i32
    %29 = arith.cmpi ne, %28, %c0_i32_18 : i32
    scf.if %29 {
      %c0_19 = arith.constant 0 : index
      %c0_20 = arith.constant 0 : index
      %30 = vector.load %arg11[%c0_19, %c0_20] : memref<8x128xf32, #tpu.memory_space<vmem>>, vector<8x128xf32>
      %c0_21 = arith.constant 0 : index
      %c0_22 = arith.constant 0 : index
      %31 = vector.load %arg8[%c0_21, %c0_22] : memref<1x128xf32, #tpu.memory_space<vmem>>, vector<1x128xf32>
      %32 = vector.broadcast %31 : vector<1x128xf32> to vector<8x128xf32>
      %33 = arith.addf %30, %32 : vector<8x128xf32>
      %c0_23 = arith.constant 0 : index
      %c0_24 = arith.constant 0 : index
      %34 = vector.load %arg2[%c0_23, %c0_24] : memref<8x128xf32, #tpu.memory_space<vmem>>, vector<8x128xf32>
      %35 = arith.addf %33, %34 : vector<8x128xf32>
      %c0_25 = arith.constant 0 : index
      %c0_26 = arith.constant 0 : index
      %36 = vector.load %arg9[%c0_25, %c0_26] : memref<8x128xf32, #tpu.memory_space<vmem>>, vector<8x128xf32>
      tpu.vector_store %arg9[%c0_25, %c0_26], %35 {strides = array<i32>} : memref<8x128xf32, #tpu.memory_space<vmem>>, vector<8x128xf32>,
    } else {
    }
    return
  }
  func.func @transform_0(%arg0: i32, %arg1: i32) -> (i32, i32) {
    %c0_i32 = arith.constant 0 : i32
    %c0_i32_0 = arith.constant 0 : i32
    return %arg0, %c0_i32 : i32, i32
  }
  func.func @transform_1(%arg0: i32, %arg1: i32) -> (i32, i32) {
    %c0_i32 = arith.constant 0 : i32
    %c0_i32_0 = arith.constant 0 : i32
    %c0_i32_1 = arith.constant 0 : i32
    return %c0_i32, %c0_i32_0 : i32, i32
  }
  func.func @transform_2(%arg0: i32, %arg1: i32) -> (i32, i32) {
    %c0_i32 = arith.constant 0 : i32
    %c0_i32_0 = arith.constant 0 : i32
    %c0_i32_1 = arith.constant 0 : i32
    return %c0_i32, %c0_i32_0 : i32, i32
  }
  func.func @transform_3(%arg0: i32, %arg1: i32) -> (i32, i32) {
    %c0_i32 = arith.constant 0 : i32
    %c0_i32_0 = arith.constant 0 : i32
    return %c0_i32, %arg1 : i32, i32
  }
  func.func @transform_4(%arg0: i32, %arg1: i32) -> (i32, i32) {
    %c0_i32 = arith.constant 0 : i32
    %c0_i32_0 = arith.constant 0 : i32
    return %c0_i32, %arg1 : i32, i32
  }
  func.func @transform_5(%arg0: i32, %arg1: i32) -> (i32, i32) {
    %c0_i32 = arith.constant 0 : i32
    %c0_i32_0 = arith.constant 0 : i32
    return %arg1, %c0_i32 : i32, i32
  }
  func.func @transform_6(%arg0: i32, %arg1: i32) -> (i32, i32) {
    %c0_i32 = arith.constant 0 : i32
    %c0_i32_0 = arith.constant 0 : i32
    %c0_i32_1 = arith.constant 0 : i32
    return %c0_i32, %c0_i32_0 : i32, i32
  }
  func.func @transform_7(%arg0: i32, %arg1: i32) -> (i32, i32) {
    %c0_i32 = arith.constant 0 : i32
    %c0_i32_0 = arith.constant 0 : i32
    return %arg0, %c0_i32 : i32, i32
  }
}

</mosaic_0001>

<llo_original>
// kernel: tpu_custom_call.1
$region0: #{tpu_custom_call.1}
  #allocation0 [shape = 'u32[]', space=smem, size = 0x4, offset = 0x4, fixed_abs, tag = 'smem constant byte address 0x4 - core index']
  #allocation1 [shape = 'u32[144,128]{1,0:T(1,128)}', space=vmem, size = 0x12000, scoped, tag = 'internal scratch']
  #allocation2 [shape = 'f32[8,128]{1,0:T(8,128)}', space=vmem, size = 0x1000, scoped, tag = 'scratch operand']
  #allocation3 [shape = 'f32[8,128]{1,0:T(8,128)}', space=vmem, size = 0x1000, scoped, tag = 'scratch operand']
  %s0 = inlined_call_operand.hbm [shape: f32[16,128], index: 0, kind: input, shape index: {}]
  %s1 = inlined_call_operand.vmem [shape: f32[1,128], index: 1, kind: input, shape index: {}]
  %s2 = inlined_call_operand.vmem [shape: f32[1,128], index: 2, kind: input, shape index: {}]
  %s3 = inlined_call_operand.hbm [shape: f32[128,128], index: 3, kind: input, shape index: {}]
  %s4 = inlined_call_operand.vmem [shape: f32[1,128], index: 4, kind: input, shape index: {}]
  %s5 = inlined_call_operand.hbm [shape: f32[128,128], index: 5, kind: input, shape index: {}]
  %s6 = inlined_call_operand.vmem [shape: f32[1,128], index: 6, kind: input, shape index: {}]
  %s7 = inlined_call_operand.hbm [shape: f32[16,128], index: 7, kind: output, shape index: {}]
  %s8 = sld [smem:[#allocation0]]
  $region81: #{tpu_custom_call.1} parent=0
    _
  %s10 = ssub.s32 1, %s8
  %s11 = scalar_select 0, %s10, %s8
  $region1: #{tpu_custom_call.1} parent=0
    #allocation4 [shape = 'u8[8192]{0}', space=vmem, size = 0x2000, scoped, tag = 'input window, operand 0']
    #allocation5 [shape = 's32[2]{0}', space=sflag, size = 0x8, scoped, tag = 'scoped memory for tpu_custom_call.1']
    #allocation6 [shape = 's32[2]{0}', space=sflag, size = 0x8, scoped, tag = 'scoped memory for tpu_custom_call.1']
    #allocation7 [shape = 'u8[65536]{0}', space=vmem, size = 0x10000, scoped, tag = 'input window, operand 3, single buffered']
    #allocation8 [shape = 's32[1]{0}', space=sflag, size = 0x4, scoped, tag = 'scoped memory for tpu_custom_call.1']
    #allocation9 [shape = 'u8[65536]{0}', space=vmem, size = 0x10000, scoped, tag = 'input window, operand 5, single buffered']
    #allocation10 [shape = 'u8[8192]{0}', space=vmem, size = 0x2000, scoped, tag = 'output window, operand 0']
    %12 = vsyncpa [#allocation5], 0
    %s13 = scalar_lea.sflag [#allocation5], 1
    %14 = vsyncpa %s13, 0
    %15 = vsyncpa [#allocation8], 0
    %16 = vsyncpa [#allocation6], 0
    %s17 = scalar_lea.sflag [#allocation6], 1
    %18 = vsyncpa %s17, 0
    loop: start=0, step=1, limit=4
    $region2: #{tpu_custom_call.1} parent=1 // loop_pre_header
      _
    $region3: #{tpu_custom_call.1} parent=1 // loop_header
      %s20 = sphi 0, %s24
      %p21 = scmp.ge.s32.totalorder %s20, 4
      %s27 = sphi 0, %s39
      %s28 = sphi 0, %s35
      %s29 = sphi 0, %s27
      %s30 = sphi 0, %s28
      %s31 = sphi 0, %s29
      %s32 = sphi 0, %s30
      %s42 = sphi 0, %s44
      %s45 = sphi 0, %s42
      %s46 = sphi 0, %s45
      %s62 = sphi 0, %s46
      %s66 = sphi 0, %s66
      %s68 = sphi 0, %s66
      %s69 = sphi 0, %s68
      %s83 = sphi 0, %s69
      %s87 = sphi 0, %s87
      %s89 = sphi 0, %s87
      %s90 = sphi 0, %s89
      %s104 = sphi 0, %s90
      %s110 = sphi 0, %s112
      %s113 = sphi 0, %s110
      %s114 = sphi 0, %s113
      %s130 = sphi 0, %s114
      %s136 = sphi 0, %s138
      %s139 = sphi 0, %s136
      %s140 = sphi 0, %s139
      %s156 = sphi 0, %s140
      %s162 = sphi 0, %s164
      %s165 = sphi 0, %s162
      %s166 = sphi 0, %s165
      %s182 = sphi 0, %s166
      %s186 = sphi 0, %s186
      %s188 = sphi 0, %s186
      %s189 = sphi 0, %s188
      %s203 = sphi 0, %s189
      %s209 = sphi 0, %s211
      %s212 = sphi 0, %s209
      %s213 = sphi 0, %s212
      %s229 = sphi 0, %s213
    $region4: #{tpu_custom_call.1} parent=1 // loop_header_branch
      %23 = sbr.rel (%p21) target = $region8
    $region5: #{tpu_custom_call.1} parent=1 // loop_body
      %s25 = ssub.s32 %s20, 1
      %s26 = ssub.s32 %s20, 2
      %s33 = sadd.s32 1, %s28
      %p34 = scmp.ge.s32.totalorder %s33, 1
      %s35 = scalar_select %p34, 0, %s33
      %s36 = sadd.s32 1, %s27
      %s37 = scalar_select %p34, %s36, %s27
      %p38 = scmp.ge.s32.totalorder %s37, 2
      %s39 = scalar_select %p38, 0, %s37
      %s40 = ssub.s32 %s27, %s39
      %p41 = scmp.eq.s32.totalorder %s40, 0
      %s43 = sadd.s32 %s42, 1
      %s44 = scalar_select %p41, %s42, %s43
      %p47 = pneg %p41
      %p48 = scmp.eq.s32.totalorder %s20, 1
      %p49 = por %p47, %p48
      %p50 = scmp.ne.s32.totalorder %s42, %s45
      %p51 = scmp.eq.s32.totalorder %s20, 0
      %p52 = por %p50, %p51
      %p53 = scmp.ne.s32.totalorder %s42, %s45
      %p54 = scmp.eq.s32.totalorder %s25, 1
      %p55 = por %p53, %p54
      %p56 = scmp.ne.s32.totalorder %s45, %s46
      %p57 = scmp.eq.s32.totalorder %s25, 0
      %p58 = por %p56, %p57
      %p59 = scmp.ne.s32.totalorder %s45, %s46
      %p60 = scmp.eq.s32.totalorder %s26, 1
      %p61 = por %p59, %p60
      %p63 = scmp.ne.s32.totalorder %s46, %s62
      %p64 = scmp.eq.s32.totalorder %s26, 0
      %p65 = por %p63, %p64
      %s67 = sadd.s32 %s66, 1
      %p70 = scmp.eq.s32.totalorder %s20, 1
      %p71 = scmp.ne.s32.totalorder %s66, %s68
      %p72 = scmp.eq.s32.totalorder %s20, 0
      %p73 = por %p71, %p72
      %p74 = scmp.ne.s32.totalorder %s66, %s68
      %p75 = scmp.eq.s32.totalorder %s25, 1
      %p76 = por %p74, %p75
      %p77 = scmp.ne.s32.totalorder %s68, %s69
      %p78 = scmp.eq.s32.totalorder %s25, 0
      %p79 = por %p77, %p78
      %p80 = scmp.ne.s32.totalorder %s68, %s69
      %p81 = scmp.eq.s32.totalorder %s26, 1
      %p82 = por %p80, %p81
      %p84 = scmp.ne.s32.totalorder %s69, %s83
      %p85 = scmp.eq.s32.totalorder %s26, 0
      %p86 = por %p84, %p85
      %s88 = sadd.s32 %s87, 1
      %p91 = scmp.eq.s32.totalorder %s20, 1
      %p92 = scmp.ne.s32.totalorder %s87, %s89
      %p93 = scmp.eq.s32.totalorder %s20, 0
      %p94 = por %p92, %p93
      %p95 = scmp.ne.s32.totalorder %s87, %s89
      %p96 = scmp.eq.s32.totalorder %s25, 1
      %p97 = por %p95, %p96
      %p98 = scmp.ne.s32.totalorder %s89, %s90
      %p99 = scmp.eq.s32.totalorder %s25, 0
      %p100 = por %p98, %p99
      %p101 = scmp.ne.s32.totalorder %s89, %s90
      %p102 = scmp.eq.s32.totalorder %s26, 1
      %p103 = por %p101, %p102
      %p105 = scmp.ne.s32.totalorder %s90, %s104
      %p106 = scmp.eq.s32.totalorder %s26, 0
      %p107 = por %p105, %p106
      %s108 = ssub.s32 %s28, %s35
      %p109 = scmp.eq.s32.totalorder %s108, 0
      %s111 = sadd.s32 %s110, 1
      %s112 = scalar_select %p109, %s110, %s111
      %p115 = pneg %p109
      %p116 = scmp.eq.s32.totalorder %s20, 1
      %p117 = por %p115, %p116
      %p118 = scmp.ne.s32.totalorder %s110, %s113
      %p119 = scmp.eq.s32.totalorder %s20, 0
      %p120 = por %p118, %p119
      %p121 = scmp.ne.s32.totalorder %s110, %s113
      %p122 = scmp.eq.s32.totalorder %s25, 1
      %p123 = por %p121, %p122
      %p124 = scmp.ne.s32.totalorder %s113, %s114
      %p125 = scmp.eq.s32.totalorder %s25, 0
      %p126 = por %p124, %p125
      %p127 = scmp.ne.s32.totalorder %s113, %s114
      %p128 = scmp.eq.s32.totalorder %s26, 1
      %p129 = por %p127, %p128
      %p131 = scmp.ne.s32.totalorder %s114, %s130
      %p132 = scmp.eq.s32.totalorder %s26, 0
      %p133 = por %p131, %p132
      %s134 = ssub.s32 %s28, %s35
      %p135 = scmp.eq.s32.totalorder %s134, 0
      %s137 = sadd.s32 %s136, 1
      %s138 = scalar_select %p135, %s136, %s137
      %p141 = pneg %p135
      %p142 = scmp.eq.s32.totalorder %s20, 1
      %p143 = por %p141, %p142
      %p144 = scmp.ne.s32.totalorder %s136, %s139
      %p145 = scmp.eq.s32.totalorder %s20, 0
      %p146 = por %p144, %p145
      %p147 = scmp.ne.s32.totalorder %s136, %s139
      %p148 = scmp.eq.s32.totalorder %s25, 1
      %p149 = por %p147, %p148
      %p150 = scmp.ne.s32.totalorder %s139, %s140
      %p151 = scmp.eq.s32.totalorder %s25, 0
      %p152 = por %p150, %p151
      %p153 = scmp.ne.s32.totalorder %s139, %s140
      %p154 = scmp.eq.s32.totalorder %s26, 1
      %p155 = por %p153, %p154
      %p157 = scmp.ne.s32.totalorder %s140, %s156
      %p158 = scmp.eq.s32.totalorder %s26, 0
      %p159 = por %p157, %p158
      %s160 = ssub.s32 %s28, %s35
      %p161 = scmp.eq.s32.totalorder %s160, 0
      %s163 = sadd.s32 %s162, 1
      %s164 = scalar_select %p161, %s162, %s163
      %p167 = pneg %p161
      %p168 = scmp.eq.s32.totalorder %s20, 1
      %p169 = por %p167, %p168
      %p170 = scmp.ne.s32.totalorder %s162, %s165
      %p171 = scmp.eq.s32.totalorder %s20, 0
      %p172 = por %p170, %p171
      %p173 = scmp.ne.s32.totalorder %s162, %s165
      %p174 = scmp.eq.s32.totalorder %s25, 1
      %p175 = por %p173, %p174
      %p176 = scmp.ne.s32.totalorder %s165, %s166
      %p177 = scmp.eq.s32.totalorder %s25, 0
      %p178 = por %p176, %p177
      %p179 = scmp.ne.s32.totalorder %s165, %s166
      %p180 = scmp.eq.s32.totalorder %s26, 1
      %p181 = por %p179, %p180
      %p183 = scmp.ne.s32.totalorder %s166, %s182
      %p184 = scmp.eq.s32.totalorder %s26, 0
      %p185 = por %p183, %p184
      %s187 = sadd.s32 %s186, 1
      %p190 = scmp.eq.s32.totalorder %s20, 1
      %p191 = scmp.ne.s32.totalorder %s186, %s188
      %p192 = scmp.eq.s32.totalorder %s20, 0
      %p193 = por %p191, %p192
      %p194 = scmp.ne.s32.totalorder %s186, %s188
      %p195 = scmp.eq.s32.totalorder %s25, 1
      %p196 = por %p194, %p195
      %p197 = scmp.ne.s32.totalorder %s188, %s189
      %p198 = scmp.eq.s32.totalorder %s25, 0
      %p199 = por %p197, %p198
      %p200 = scmp.ne.s32.totalorder %s188, %s189
      %p201 = scmp.eq.s32.totalorder %s26, 1
      %p202 = por %p200, %p201
      %p204 = scmp.ne.s32.totalorder %s189, %s203
      %p205 = scmp.eq.s32.totalorder %s26, 0
      %p206 = por %p204, %p205
      %s207 = ssub.s32 %s27, %s39
      %p208 = scmp.eq.s32.totalorder %s207, 0
      %s210 = sadd.s32 %s209, 1
      %s211 = scalar_select %p208, %s209, %s210
      %p214 = pneg %p208
      %p215 = scmp.eq.s32.totalorder %s20, 1
      %p216 = por %p214, %p215
      %p217 = scmp.ne.s32.totalorder %s209, %s212
      %p218 = scmp.eq.s32.totalorder %s20, 0
      %p219 = por %p217, %p218
      %p220 = scmp.ne.s32.totalorder %s209, %s212
      %p221 = scmp.eq.s32.totalorder %s25, 1
      %p222 = por %p220, %p221
      %p223 = scmp.ne.s32.totalorder %s212, %s213
      %p224 = scmp.eq.s32.totalorder %s25, 0
      %p225 = por %p223, %p224
      %p226 = scmp.ne.s32.totalorder %s212, %s213
      %p227 = scmp.eq.s32.totalorder %s26, 1
      %p228 = por %p226, %p227
      %p230 = scmp.ne.s32.totalorder %s213, %s229
      %p231 = scmp.eq.s32.totalorder %s26, 0
      %p232 = por %p230, %p231
      %p233 = scmp.le.s32.totalorder 1, %s20
      %p234 = scmp.lt.s32.totalorder %s20, 3
      %p235 = pnand %p233, %p234
      %p236 = pneg %p235
      // Predicated region
      $region9: #{tpu_custom_call.1} parent=5 // pred_check
        _
      $region10: #{tpu_custom_call.1} parent=5 // pred_check_branch
        %238 = sbr.rel (%p235) target = $region12
      $region11: #{tpu_custom_call.1} parent=5 // pred_region
        %s239 = ssub.s32 %s20, 1
        // Predicated region
        $region13: #{tpu_custom_call.1} parent=11 // pred_check
          %p240 = pneg %p79
        $region14: #{tpu_custom_call.1} parent=11 // pred_check_branch
          %242 = sbr.rel (%p240) target = $region16
        $region15: #{tpu_custom_call.1} parent=11 // pred_region
          _
        $region16: #{tpu_custom_call.1} parent=11 // pred_fallthru
          _
        // Predicated region
        $region17: #{tpu_custom_call.1} parent=11 // pred_check
          %p243 = pneg %p100
        $region18: #{tpu_custom_call.1} parent=11 // pred_check_branch
          %245 = sbr.rel (%p243) target = $region20
        $region19: #{tpu_custom_call.1} parent=11 // pred_region
          _
        $region20: #{tpu_custom_call.1} parent=11 // pred_fallthru
          _
        // Predicated region
        $region21: #{tpu_custom_call.1} parent=11 // pred_check
          %p246 = pneg %p126
        $region22: #{tpu_custom_call.1} parent=11 // pred_check_branch
          %248 = sbr.rel (%p246) target = $region24
        $region23: #{tpu_custom_call.1} parent=11 // pred_region
          %s250 = ssub.s32 2048, 2048
          %251 = vsyncadd [#allocation8], %s250
          %s252 = smul.addr %s30, 128
          %s253 = scalar_lea.hbm %s3, %s252
          %s254 = sshll.u32 [#allocation7], 4
          %s255 = int_to_ptr.vmem [resolvable:$true] %s254
          %260 = dma.hbm_to_vmem [thread:$0]  %s253, 2048, %s255, [#allocation8], 128, 128, 8
        $region24: #{tpu_custom_call.1} parent=11 // pred_fallthru
          _
        // Predicated region
        $region25: #{tpu_custom_call.1} parent=11 // pred_check
          %p261 = pneg %p152
        $region26: #{tpu_custom_call.1} parent=11 // pred_check_branch
          %263 = sbr.rel (%p261) target = $region28
        $region27: #{tpu_custom_call.1} parent=11 // pred_region
          %p264 = scmp.lt.s32.totalorder %s30, 0
          %s265 = scalar_select %p264, %s30, 0
          %s266 = scalar_lea.vmem %s4, %s265
        $region28: #{tpu_custom_call.1} parent=11 // pred_fallthru
          _
        // Predicated region
        $region29: #{tpu_custom_call.1} parent=11 // pred_check
          %p267 = pneg %p178
        $region30: #{tpu_custom_call.1} parent=11 // pred_check_branch
          %269 = sbr.rel (%p267) target = $region32
        $region31: #{tpu_custom_call.1} parent=11 // pred_region
          %s270 = smul.u32 16, %s30
          %s272 = ssub.s32 2048, 2048
          %273 = vsyncadd [#allocation8], %s272
          %s274 = smul.addr %s270, 128
          %s275 = scalar_lea.hbm %s5, %s274
          %s276 = sshll.u32 [#allocation9], 4
          %s277 = int_to_ptr.vmem [resolvable:$true] %s276
          %282 = dma.hbm_to_vmem [thread:$0]  %s275, 2048, %s277, [#allocation8], 128, 128, 8
        $region32: #{tpu_custom_call.1} parent=11 // pred_fallthru
          _
        // Predicated region
        $region33: #{tpu_custom_call.1} parent=11 // pred_check
          %p283 = pneg %p199
        $region34: #{tpu_custom_call.1} parent=11 // pred_check_branch
          %285 = sbr.rel (%p283) target = $region36
        $region35: #{tpu_custom_call.1} parent=11 // pred_region
          _
        $region36: #{tpu_custom_call.1} parent=11 // pred_fallthru
          _
      $region12: #{tpu_custom_call.1} parent=5 // pred_fallthru
        _
      %p286 = scmp.lt.s32.totalorder %s20, 2
      // Predicated region
      $region37: #{tpu_custom_call.1} parent=5 // pred_check
        %p287 = pneg %p286
      $region38: #{tpu_custom_call.1} parent=5 // pred_check_branch
        %289 = sbr.rel (%p287) target = $region40
      $region39: #{tpu_custom_call.1} parent=5 // pred_region
        // Predicated region
        $region41: #{tpu_custom_call.1} parent=39 // pred_check
          %p290 = pneg %p52
        $region42: #{tpu_custom_call.1} parent=39 // pred_check_branch
          %292 = sbr.rel (%p290) target = $region44
        $region43: #{tpu_custom_call.1} parent=39 // pred_region
          %s293 = sand.u32 %s42, 1
          %s294 = scalar_lea.sflag [#allocation5], %s293
          %s295 = sand.u32 %s42, 1
          %s296 = smul.addr %s295, 8
          %s297 = scalar_lea.vmem [#allocation4], %s296
          %s299 = ssub.s32 128, 128
          %300 = vsyncadd %s294, %s299
          %s301 = smul.addr %s27, 128
          %s302 = scalar_lea.hbm %s0, %s301
          %s304 = sshll.u32 %s297, 4
          %s305 = int_to_ptr.vmem [resolvable:$true] %s304
          %307 = dma.hbm_to_vmem [thread:$0]  %s302, 128, %s305, %s294
        $region44: #{tpu_custom_call.1} parent=39 // pred_fallthru
          _
      $region40: #{tpu_custom_call.1} parent=5 // pred_fallthru
        _
      %p308 = scmp.le.s32.totalorder 1, %s20
      %p309 = scmp.lt.s32.totalorder %s20, 3
      %p310 = pnand %p308, %p309
      %p311 = pneg %p310
      // Predicated region
      $region45: #{tpu_custom_call.1} parent=5 // pred_check
        _
      $region46: #{tpu_custom_call.1} parent=5 // pred_check_branch
        %313 = sbr.rel (%p310) target = $region48
      $region47: #{tpu_custom_call.1} parent=5 // pred_region
        %s314 = ssub.s32 %s20, 1
        %s315 = sand.u32 %s45, 1
        %s316 = scalar_lea.sflag [#allocation5], %s315
        %s317 = sand.u32 %s45, 1
        %s318 = smul.addr %s317, 8
        %s319 = scalar_lea.vmem [#allocation4], %s318
        // Predicated region
        $region49: #{tpu_custom_call.1} parent=47 // pred_check
          %p320 = pneg %p58
        $region50: #{tpu_custom_call.1} parent=47 // pred_check_branch
          %322 = sbr.rel (%p320) target = $region52
        $region51: #{tpu_custom_call.1} parent=47 // pred_region
          %323 = dma.done %s316, 128
        $region52: #{tpu_custom_call.1} parent=47 // pred_fallthru
          _
        // Predicated region
        $region53: #{tpu_custom_call.1} parent=47 // pred_check
          %p324 = pneg %p126
        $region54: #{tpu_custom_call.1} parent=47 // pred_check_branch
          %326 = sbr.rel (%p324) target = $region56
        $region55: #{tpu_custom_call.1} parent=47 // pred_region
          %327 = dma.done [#allocation8], 2048
        $region56: #{tpu_custom_call.1} parent=47 // pred_fallthru
          _
        // Predicated region
        $region57: #{tpu_custom_call.1} parent=47 // pred_check
          %p328 = pneg %p178
        $region58: #{tpu_custom_call.1} parent=47 // pred_check_branch
          %330 = sbr.rel (%p328) target = $region60
        $region59: #{tpu_custom_call.1} parent=47 // pred_region
          %331 = dma.done [#allocation8], 2048
        $region60: #{tpu_custom_call.1} parent=47 // pred_fallthru
          _
        %s332 = sand.u32 %s45, 1
        %s333 = scalar_lea.sflag [#allocation5], %s332
        %s334 = sand.u32 %s45, 1
        %s335 = smul.addr %s334, 8
        %s336 = scalar_lea.vmem [#allocation4], %s335
        %p337 = pneg %p58
        %p338 = pneg %p55
        %p339 = pneg %p79
        %p340 = pneg %p76
        %p341 = pneg %p100
        %p342 = pneg %p97
        %p343 = pneg %p126
        %p344 = pneg %p123
        %p345 = scmp.lt.s32.totalorder %s30, 0
        %s346 = scalar_select %p345, %s30, 0
        %s347 = scalar_lea.vmem %s4, %s346
        %p348 = pneg %p152
        %p349 = pneg %p149
        %p350 = pneg %p178
        %p351 = pneg %p175
        %p352 = pneg %p199
        %p353 = pneg %p196
        %p354 = pneg %p225
        %p355 = pneg %p222
        %s356 = sand.u32 %s212, 1
        %s357 = scalar_lea.sflag [#allocation6], %s356
        %s358 = sand.u32 %s212, 1
        %s359 = smul.addr %s358, 8
        %s360 = scalar_lea.vmem [#allocation10], %s359
        %p361 = scmp.lt.s32.totalorder %s30, 0
        %s362 = scalar_select %p361, %s30, 0
        %s363 = scalar_lea.vmem %s4, %s362
        %s364 = smul.u32 16, %s30
        %p365 = scmp.eq.s32.totalorder %s30, 0
        // Predicated region
        $region61: #{tpu_custom_call.1} parent=47 // pred_check
          %p366 = pneg %p365
        $region62: #{tpu_custom_call.1} parent=47 // pred_check_branch
          %368 = sbr.rel (%p366) target = $region64
        $region63: #{tpu_custom_call.1} parent=47 // pred_region
          %v369 = vld [vmem:[%s319] sm:$0xff]
          %370 = vadd.xlane.f32.xlu0 %v369
          %v371 = vpop.xlane.xlu0 %370
          %v372 = vmul.f32 %v371, 0.03125
          %v373 = vmul.f32 %v369, %v369
          %374 = vadd.xlane.f32.xlu0 %v373
          %v375 = vpop.xlane.xlu0 %374
          %v376 = vmul.f32 %v375, 0.03125
          %v377 = vmul.f32 %v372, %v372
          %v378 = vsub.f32 %v376, %v377
          %v379 = vsub.f32 %v369, %v372
          %v380 = vadd.f32 %v378, 1e-05
          %v381 = vrsqrt.pop %v380
          %v382 = vmul.f32 %v379, %v381
          %v383 = vld [vmem:[%s1] sm:$0x1]
          %v385 = vlaneseq
          %v386 = vshrl.u32 %v385, 7
          %v387 = vsub.s32 0, %v386
          %v388 = vrot.slane %v383, %v387
          %v390 = vmul.f32 %v382, %v388
          %v391 = vld [vmem:[%s2] sm:$0x1]
          %v393 = vlaneseq
          %v394 = vshrl.u32 %v393, 7
          %v395 = vsub.s32 0, %v394
          %v396 = vrot.slane %v391, %v395
          %v398 = vadd.f32 %v390, %v396
          %399 = vst [vmem:[#allocation2] sm:$0xff] %v398
          %400 = vst [vmem:[#allocation3] sm:$0xff] 0.0
        $region64: #{tpu_custom_call.1} parent=47 // pred_fallthru
          _
        %v401 = vld [vmem:[#allocation2] sm:$0xff]
        %v402 = vld [vmem:[#allocation7] sm:$0xff]
        %v403 = vld [vmem:[#allocation7 + $0x8] sm:$0xff]
        %v404 = vld [vmem:[#allocation7 + $0x10] sm:$0xff]
        %v405 = vld [vmem:[#allocation7 + $0x18] sm:$0xff]
        %v406 = vld [vmem:[#allocation7 + $0x20] sm:$0xff]
        %v407 = vld [vmem:[#allocation7 + $0x28] sm:$0xff]
        %v408 = vld [vmem:[#allocation7 + $0x30] sm:$0xff]
        %v409 = vld [vmem:[#allocation7 + $0x38] sm:$0xff]
        %v410 = vld [vmem:[#allocation7 + $0x40] sm:$0xff]
        %v411 = vld [vmem:[#allocation7 + $0x48] sm:$0xff]
        %v412 = vld [vmem:[#allocation7 + $0x50] sm:$0xff]
        %v413 = vld [vmem:[#allocation7 + $0x58] sm:$0xff]
        %v414 = vld [vmem:[#allocation7 + $0x60] sm:$0xff]
        %v415 = vld [vmem:[#allocation7 + $0x68] sm:$0xff]
        %v416 = vld [vmem:[#allocation7 + $0x70] sm:$0xff]
        %v417 = vld [vmem:[#allocation7 + $0x78] sm:$0xff]
        %v418 = vld [vmem:[%s363] sm:$0x1]
        %v420 = vlaneseq
        %v421 = vshrl.u32 %v420, 7
        %v422 = vsub.s32 0, %v421
        %v423 = vrot.slane %v418, %v422
        %425 = vmatprep.subr.mxu0 0.0
        %426 = vmatpush1.msra.mxu0 %v417
        %427 = vmatprep.subr.mxu0 0.0
        %428 = vmatpush1.msra.mxu0 %v416
        %429 = vmatprep.subr.mxu0 0.0
        %430 = vmatpush1.msra.mxu0 %v415
        %431 = vmatprep.subr.mxu0 0.0
        %432 = vmatpush1.msra.mxu0 %v414
        %433 = vmatprep.subr.mxu0 0.0
        %434 = vmatpush1.msra.mxu0 %v413
        %435 = vmatprep.subr.mxu0 0.0
        %436 = vmatpush1.msra.mxu0 %v412
        %437 = vmatprep.subr.mxu0 0.0
        %438 = vmatpush1.msra.mxu0 %v411
        %439 = vmatprep.subr.mxu0 0.0
        %440 = vmatpush1.msra.mxu0 %v410
        %441 = vmatprep.subr.mxu0 0.0
        %442 = vmatpush1.msra.mxu0 %v409
        %443 = vmatprep.subr.mxu0 0.0
        %444 = vmatpush1.msra.mxu0 %v408
        %445 = vmatprep.subr.mxu0 0.0
        %446 = vmatpush1.msra.mxu0 %v407
        %447 = vmatprep.subr.mxu0 0.0
        %448 = vmatpush1.msra.mxu0 %v406
        %449 = vmatprep.subr.mxu0 0.0
        %450 = vmatpush1.msra.mxu0 %v405
        %451 = vmatprep.subr.mxu0 0.0
        %452 = vmatpush1.msra.mxu0 %v404
        %453 = vmatprep.subr.mxu0 0.0
        %454 = vmatpush1.msra.mxu0 %v403
        %455 = vmatprep.subr.mxu0 0.0
        %456 = vmatpush1.msra.mxu0 %v402
        %457 = vmatprep.subr.mxu0 0.0
        %458 = vmatpush2.msra.mxu0 0.0
        %459 = vmatprep.subr.mxu0 0.0
        %460 = vmatpush2.msra.mxu0 0.0
        %461 = vmatprep.subr.mxu0 0.0
        %462 = vmatpush2.msra.mxu0 0.0
        %463 = vmatprep.subr.mxu0 0.0
        %464 = vmatpush2.msra.mxu0 0.0
        %465 = vmatprep.subr.mxu0 0.0
        %466 = vmatpush2.msra.mxu0 0.0
        %467 = vmatprep.subr.mxu0 0.0
        %468 = vmatpush2.msra.mxu0 0.0
        %469 = vmatprep.subr.mxu0 0.0
        %470 = vmatpush2.msra.mxu0 0.0
        %471 = vmatprep.subr.mxu0 0.0
        %472 = vmatpush2.msra.mxu0 0.0
        %473 = vmatprep.subr.mxu0 0.0
        %474 = vmatpush2.msra.mxu0 0.0
        %475 = vmatprep.subr.mxu0 0.0
        %476 = vmatpush2.msra.mxu0 0.0
        %477 = vmatprep.subr.mxu0 0.0
        %478 = vmatpush2.msra.mxu0 0.0
        %479 = vmatprep.subr.mxu0 0.0
        %480 = vmatpush2.msra.mxu0 0.0
        %481 = vmatprep.subr.mxu0 0.0
        %482 = vmatpush2.msra.mxu0 0.0
        %483 = vmatprep.subr.mxu0 0.0
        %484 = vmatpush2.msra.mxu0 0.0
        %485 = vmatprep.subr.mxu0 0.0
        %486 = vmatpush2.msra.mxu0 0.0
        %487 = vmatprep.subr.mxu0 0.0
        %488 = vmatpush2.msra.mxu0 0.0
        %489 = vmatprep.mubr.f32.mxu0 0.0
        %490 = vmatmul.mubr.f32.gmra.mxu0 %v401
        %v491 = vpop.f32.mrf.mxu0
        %v492 = vadd.f32 %v423, %v491
        %v493 = vpop.f32.mrf.mxu0
        %494 = vdwg.mxu0
        %v495 = vmul.f32 %v492, 0.5
        %v496 = vmul.f32 %v492, 0.044715
        %v497 = vmul.f32 %v496, %v492
        %v498 = vmul.f32 %v497, %v492
        %v499 = vadd.f32 %v492, %v498
        %v500 = vmul.f32 %v499, 0.7978846
        %v501 = vtanh.pop %v500
        %v502 = vadd.f32 %v501, 1.0
        %v503 = vmul.f32 %v495, %v502
        %v504 = vld [vmem:[#allocation3] sm:$0xff]
        %v505 = vld [vmem:[#allocation9] sm:$0xff]
        %v506 = vld [vmem:[#allocation9 + $0x8] sm:$0xff]
        %v507 = vld [vmem:[#allocation9 + $0x10] sm:$0xff]
        %v508 = vld [vmem:[#allocation9 + $0x18] sm:$0xff]
        %v509 = vld [vmem:[#allocation9 + $0x20] sm:$0xff]
        %v510 = vld [vmem:[#allocation9 + $0x28] sm:$0xff]
        %v511 = vld [vmem:[#allocation9 + $0x30] sm:$0xff]
        %v512 = vld [vmem:[#allocation9 + $0x38] sm:$0xff]
        %v513 = vld [vmem:[#allocation9 + $0x40] sm:$0xff]
        %v514 = vld [vmem:[#allocation9 + $0x48] sm:$0xff]
        %v515 = vld [vmem:[#allocation9 + $0x50] sm:$0xff]
        %v516 = vld [vmem:[#allocation9 + $0x58] sm:$0xff]
        %v517 = vld [vmem:[#allocation9 + $0x60] sm:$0xff]
        %v518 = vld [vmem:[#allocation9 + $0x68] sm:$0xff]
        %v519 = vld [vmem:[#allocation9 + $0x70] sm:$0xff]
        %v520 = vld [vmem:[#allocation9 + $0x78] sm:$0xff]
        %521 = vmatprep.subr.mxu0 0.0
        %522 = vmatpush1.msra.mxu0 %v520
        %523 = vmatprep.subr.mxu0 0.0
        %524 = vmatpush1.msra.mxu0 %v519
        %525 = vmatprep.subr.mxu0 0.0
        %526 = vmatpush1.msra.mxu0 %v518
        %527 = vmatprep.subr.mxu0 0.0
        %528 = vmatpush1.msra.mxu0 %v517
        %529 = vmatprep.subr.mxu0 0.0
        %530 = vmatpush1.msra.mxu0 %v516
        %531 = vmatprep.subr.mxu0 0.0
        %532 = vmatpush1.msra.mxu0 %v515
        %533 = vmatprep.subr.mxu0 0.0
        %534 = vmatpush1.msra.mxu0 %v514
        %535 = vmatprep.subr.mxu0 0.0
        %536 = vmatpush1.msra.mxu0 %v513
        %537 = vmatprep.subr.mxu0 0.0
        %538 = vmatpush1.msra.mxu0 %v512
        %539 = vmatprep.subr.mxu0 0.0
        %540 = vmatpush1.msra.mxu0 %v511
        %541 = vmatprep.subr.mxu0 0.0
        %542 = vmatpush1.msra.mxu0 %v510
        %543 = vmatprep.subr.mxu0 0.0
        %544 = vmatpush1.msra.mxu0 %v509
        %545 = vmatprep.subr.mxu0 0.0
        %546 = vmatpush1.msra.mxu0 %v508
        %547 = vmatprep.subr.mxu0 0.0
        %548 = vmatpush1.msra.mxu0 %v507
        %549 = vmatprep.subr.mxu0 0.0
        %550 = vmatpush1.msra.mxu0 %v506
        %551 = vmatprep.subr.mxu0 0.0
        %552 = vmatpush1.msra.mxu0 %v505
        %553 = vmatprep.subr.mxu0 0.0
        %554 = vmatpush2.msra.mxu0 0.0
        %555 = vmatprep.subr.mxu0 0.0
        %556 = vmatpush2.msra.mxu0 0.0
        %557 = vmatprep.subr.mxu0 0.0
        %558 = vmatpush2.msra.mxu0 0.0
        %559 = vmatprep.subr.mxu0 0.0
        %560 = vmatpush2.msra.mxu0 0.0
        %561 = vmatprep.subr.mxu0 0.0
        %562 = vmatpush2.msra.mxu0 0.0
        %563 = vmatprep.subr.mxu0 0.0
        %564 = vmatpush2.msra.mxu0 0.0
        %565 = vmatprep.subr.mxu0 0.0
        %566 = vmatpush2.msra.mxu0 0.0
        %567 = vmatprep.subr.mxu0 0.0
        %568 = vmatpush2.msra.mxu0 0.0
        %569 = vmatprep.subr.mxu0 0.0
        %570 = vmatpush2.msra.mxu0 0.0
        %571 = vmatprep.subr.mxu0 0.0
        %572 = vmatpush2.msra.mxu0 0.0
        %573 = vmatprep.subr.mxu0 0.0
        %574 = vmatpush2.msra.mxu0 0.0
        %575 = vmatprep.subr.mxu0 0.0
        %576 = vmatpush2.msra.mxu0 0.0
        %577 = vmatprep.subr.mxu0 0.0
        %578 = vmatpush2.msra.mxu0 0.0
        %579 = vmatprep.subr.mxu0 0.0
        %580 = vmatpush2.msra.mxu0 0.0
        %581 = vmatprep.subr.mxu0 0.0
        %582 = vmatpush2.msra.mxu0 0.0
        %583 = vmatprep.subr.mxu0 0.0
        %584 = vmatpush2.msra.mxu0 0.0
        %585 = vmatprep.mubr.f32.mxu0 0.0
        %586 = vmatmul.mubr.f32.gmra.mxu0 %v503
        %v587 = vpop.f32.mrf.mxu0
        %v588 = vadd.f32 0.0, %v587
        %v589 = vpop.f32.mrf.mxu0
        %590 = vdwg.mxu0
        %v591 = vadd.f32 %v504, %v588
        %592 = vst [vmem:[#allocation3] sm:$0xff] %v591
        // Predicated region
        $region65: #{tpu_custom_call.1} parent=47 // pred_check
          %p593 = pneg %p365
        $region66: #{tpu_custom_call.1} parent=47 // pred_check_branch
          %595 = sbr.rel (%p593) target = $region68
        $region67: #{tpu_custom_call.1} parent=47 // pred_region
          %v596 = vld [vmem:[#allocation3] sm:$0xff]
          %v597 = vld [vmem:[%s6] sm:$0x1]
          %v599 = vlaneseq
          %v600 = vshrl.u32 %v599, 7
          %v601 = vsub.s32 0, %v600
          %v602 = vrot.slane %v597, %v601
          %v604 = vadd.f32 %v596, %v602
          %v605 = vld [vmem:[%s319] sm:$0xff]
          %v606 = vadd.f32 %v604, %v605
          %607 = vst [vmem:[%s360] sm:$0xff] %v606
        $region68: #{tpu_custom_call.1} parent=47 // pred_fallthru
          _
        %s608 = sand.u32 %s212, 1
        %s609 = scalar_lea.sflag [#allocation6], %s608
        %s610 = sand.u32 %s212, 1
        %s611 = smul.addr %s610, 8
        %s612 = scalar_lea.vmem [#allocation10], %s611
        // Predicated region
        $region69: #{tpu_custom_call.1} parent=47 // pred_check
          %p613 = pneg %p222
        $region70: #{tpu_custom_call.1} parent=47 // pred_check_branch
          %615 = sbr.rel (%p613) target = $region72
        $region71: #{tpu_custom_call.1} parent=47 // pred_region
          %s617 = ssub.s32 128, 128
          %618 = vsyncadd %s609, %s617
          %s619 = smul.addr %s29, 128
          %s620 = scalar_lea.hbm %s7, %s619
          %s622 = sshll.u32 %s612, 4
          %s623 = int_to_ptr.vmem [resolvable:$true] %s622
          %625 = dma.vmem_to_hbm [thread:$0]  %s623, 128, %s620, %s609
        $region72: #{tpu_custom_call.1} parent=47 // pred_fallthru
          _
      $region48: #{tpu_custom_call.1} parent=5 // pred_fallthru
        _
      %p626 = scmp.le.s32.totalorder 2, %s20
      // Predicated region
      $region73: #{tpu_custom_call.1} parent=5 // pred_check
        %p627 = pneg %p626
      $region74: #{tpu_custom_call.1} parent=5 // pred_check_branch
        %629 = sbr.rel (%p627) target = $region76
      $region75: #{tpu_custom_call.1} parent=5 // pred_region
        %s630 = ssub.s32 %s20, 2
        // Predicated region
        $region77: #{tpu_custom_call.1} parent=75 // pred_check
          %p631 = pneg %p228
        $region78: #{tpu_custom_call.1} parent=75 // pred_check_branch
          %633 = sbr.rel (%p631) target = $region80
        $region79: #{tpu_custom_call.1} parent=75 // pred_region
          %s634 = sand.u32 %s213, 1
          %s635 = scalar_lea.sflag [#allocation6], %s634
          %s636 = sand.u32 %s213, 1
          %s637 = smul.addr %s636, 8
          %s638 = scalar_lea.vmem [#allocation10], %s637
          %639 = dma.done %s635, 128
        $region80: #{tpu_custom_call.1} parent=75 // pred_fallthru
          _
      $region76: #{tpu_custom_call.1} parent=5 // pred_fallthru
        _
    $region6: #{tpu_custom_call.1} parent=1 // loop_footer
      %s24 = sadd.s32 1, %s20
    $region7: #{tpu_custom_call.1} parent=1 // loop_footer_branch
      %19 = sbr.rel target = $region3
    $region8: #{tpu_custom_call.1} parent=1 // loop_exit
      _
    %640 = vsyncpa [#allocation5], 1
    %s641 = scalar_lea.sflag [#allocation5], 1
    %642 = vsyncpa %s641, 1
    %643 = vsyncpa [#allocation8], 1
    %644 = vsyncpa [#allocation6], 1
    %s645 = scalar_lea.sflag [#allocation6], 1
    %646 = vsyncpa %s645, 1

</llo_original>
